<compile_context>
chip_gen: v7x
topology: tpu7x:2x2x1
jax: 0.10.0
libtpu: 0.0.40
codegen_flags: <defaults>
</compile_context>

<pallas_src>
import functools

import jax
import jax.numpy as jnp
from jax.experimental import pallas as pl
from jax.experimental.pallas import tpu as pltpu


def _trid_kernel(x_ref, stats_ref, o_ref, *, eps, hw):
    x = x_ref[...].astype(jnp.float32)                      # (tile_r, HW)

    # One-pass per-row statistics over the spatial axis (H*W).
    s1 = jnp.sum(x, axis=-1, keepdims=True)                 # (tile_r, 1)
    s2 = jnp.sum(x * x, axis=-1, keepdims=True)             # (tile_r, 1)
    mu = s1 * jnp.float32(1.0 / hw)
    # torch.var default is unbiased (divide by HW - 1); guard HW == 1.
    var = (s2 - s1 * mu) * jnp.float32(1.0 / max(hw - 1, 1))
    var = jnp.maximum(var, jnp.float32(0.0))                # one-pass can go tiny-negative
    sig = jnp.sqrt(var + jnp.float32(eps))                  # (tile_r, 1)

    # Pre-mixed per-row randoms: [mu_rand*b, var_rand*b, 1-b]
    b_mu = stats_ref[:, 0:1]
    b_sig = stats_ref[:, 1:2]
    one_minus_b = stats_ref[:, 2:3]

    mu_mix = b_mu + mu * one_minus_b                        # (tile_r, 1)
    sig_mix = b_sig + sig * one_minus_b                     # (tile_r, 1)

    # Fused tail: (x - mu)/sig * sig_mix + mu_mix  ==  x*scale + shift
    # scale/shift are per-row, so the per-element cost is one mul + one add.
    scale = sig_mix / sig                                   # per-row divide
    shift = mu_mix - mu * scale
    o_ref[...] = (x * scale + shift).astype(o_ref.dtype)


def _round_up(v, m):
    return ((v + m - 1) // m) * m


def _gen_params():
    """Generation-aware knobs: (max_block_f32_bytes, vmem_limit_cap, num_tc)."""
    kind = ""
    try:
        kind = jax.devices()[0].device_kind.lower()
    except Exception:
        pass
    if "v7" in kind or "tpu7" in kind:
        # 64 MiB physical VMEM, ~3.2 TB/s HBM, 2 TensorCores per chip.
        return 6 << 20, 48 << 20, 2
    if "v6" in kind or "tpu6" in kind:
        # 128 MiB physical VMEM, ~1.4 TB/s HBM, 1 TensorCore.
        return 12 << 20, 96 << 20, 1
    if "v5" in kind or "tpu5" in kind:
        # 128 MiB physical VMEM, ~0.8 TB/s HBM, 1 TensorCore.
        return 8 << 20, 80 << 20, 1
    # Unknown generation: conservative VMEM assumptions, no forced split.
    return 6 << 20, 48 << 20, 1


def _choose_tile_r(r, hw, sublane, max_block_f32_bytes, num_tc):
    """Pick the row tile.

    Budget is computed in f32 bytes (the in-kernel temporaries are f32 even
    for bf16 I/O).  On multi-TensorCore chips we force >= 2 grid steps per
    core so the row axis shards across cores and the pipeline overlaps;
    single-TC chips (v5e/v6e) get no forced split.
    """
    row_f32_bytes = max(hw * 4, 1)
    tile_r = (max_block_f32_bytes // row_f32_bytes) // sublane * sublane
    tile_r = max(tile_r, sublane)
    if tile_r >= r:
        # Single full-extent block (full array dim is always a legal block dim).
        tile_r = r
    if num_tc > 1:
        min_steps = 2 * num_tc
        while pl.cdiv(r, tile_r) < min_steps and tile_r > sublane:
            nxt = _round_up(pl.cdiv(tile_r, 2), sublane)
            if nxt >= tile_r:
                break
            tile_r = nxt
    return tile_r


def trid_apply(x, mu_random, var_random, bernoulli, *, eps=1e-6):
    """Run the TriD normalize-and-mix hot path in a Pallas kernel.

    Args:
      x: (N, C, H, W) float32 or bfloat16
      mu_random, var_random, bernoulli: (N, C, 1, 1)
    Returns:
      (N, C, H, W), same dtype as x.
    """
    N, C, H, W = x.shape
    R, HW = N * C, H * W

    x2 = x.reshape(R, HW)
    mu_r = mu_random.reshape(R, 1).astype(jnp.float32)
    var_r = var_random.reshape(R, 1).astype(jnp.float32)
    b = bernoulli.reshape(R, 1).astype(jnp.float32)

    # Single (R, 3) side input: [mu_rand*b, var_rand*b, 1-b] -> one small DMA.
    stats = jnp.concatenate([mu_r * b, var_r * b, 1.0 - b], axis=1)

    itemsize = jnp.dtype(x.dtype).itemsize
    sublane = 16 if itemsize == 2 else 8
    max_block_f32_bytes, vmem_cap, num_tc = _gen_params()

    tile_r = _choose_tile_r(R, HW, sublane, max_block_f32_bytes, num_tc)
    grid = (pl.cdiv(R, tile_r),)

    # Explicit VMEM budget: double-buffered in + out blocks, ~2 f32-block
    # in-kernel temporaries, stats side input, plus margin; clamped to the
    # generation cap (well under physical VMEM on every generation).
    block_bytes = tile_r * HW * itemsize
    block_f32_bytes = tile_r * HW * 4
    stats_bytes = tile_r * 128 * 4  # (tile_r, 3) padded to 128 lanes in VMEM
    needed = 2 * (2 * block_bytes) + 2 * block_f32_bytes + 2 * stats_bytes
    vmem_limit = int(min(max(needed * 5 // 4 + (2 << 20), 16 << 20), vmem_cap))

    kernel = functools.partial(_trid_kernel, eps=eps, hw=HW)

    out2 = pl.pallas_call(
        kernel,
        out_shape=jax.ShapeDtypeStruct((R, HW), x.dtype),
        grid_spec=pltpu.PrefetchScalarGridSpec(
            num_scalar_prefetch=0,
            grid=grid,
            in_specs=[
                pl.BlockSpec((tile_r, HW), lambda i: (i, 0)),
                pl.BlockSpec((tile_r, 3), lambda i: (i, 0)),
            ],
            out_specs=pl.BlockSpec((tile_r, HW), lambda i: (i, 0)),
        ),
        compiler_params=pltpu.CompilerParams(
            dimension_semantics=("parallel",),
            vmem_limit_bytes=vmem_limit),
    )(x2, stats)

    return out2.reshape(N, C, H, W)


def trid_forward(x, key, *, p=0.5, eps=1e-6, alpha=0.1, activated=True):
    """Full TriD forward: random gate + random statistics sampled in JAX glue,
    normalization / mixing done in the Pallas kernel.  The kernel is skipped
    entirely (lax.cond) when the gate does not fire."""
    if not activated:
        return x

    N, C, H, W = x.shape
    k_gate, k_mu, k_var, k_beta, k_bern = jax.random.split(key, 5)

    # `if np.random.random() > p: return x`
    gate = jax.random.uniform(k_gate, ()) <= p

    def _augment(xx):
        mu_random = jax.random.uniform(k_mu, (N, C, 1, 1), dtype=jnp.float32)
        var_random = jax.random.uniform(k_var, (N, C, 1, 1), dtype=jnp.float32)
        lmda = jax.random.beta(k_beta, alpha, alpha, (N, C, 1, 1),
                               dtype=jnp.float32)
        bernoulli = jax.random.bernoulli(k_bern, lmda).astype(jnp.float32)
        return trid_apply(xx, mu_random, var_random, bernoulli, eps=eps)

    return jax.lax.cond(gate, _augment, lambda xx: xx, x)


def _reference(x, mu_random, var_random, bernoulli, eps=1e-6):
    """Pure-JAX reference mirroring the PyTorch forward (unbiased var)."""
    x = x.astype(jnp.float32)
    mu = jnp.mean(x, axis=(2, 3), keepdims=True)
    var = jnp.var(x, axis=(2, 3), keepdims=True, ddof=1)
    sig = jnp.sqrt(var + eps)
    x_normed = (x - mu) / sig
    mu_mix = mu_random * bernoulli + mu * (1.0 - bernoulli)
    sig_mix = var_random * bernoulli + sig * (1.0 - bernoulli)
    return x_normed * sig_mix + mu_mix


if __name__ == "__main__":
    key = jax.random.PRNGKey(0)
    k_x, k_fwd, k_mu, k_var, k_bern, k_x2 = jax.random.split(key, 6)

    # Primary small case (R = 8, HW = 256), float32.
    N, C, H, W = 2, 4, 16, 16
    x = jax.random.normal(k_x, (N, C, H, W), dtype=jnp.float32)
    mu_random = jax.random.uniform(k_mu, (N, C, 1, 1), dtype=jnp.float32)
    var_random = jax.random.uniform(k_var, (N, C, 1, 1), dtype=jnp.float32)
    lmda = jax.random.beta(k_fwd, 0.1, 0.1, (N, C, 1, 1), dtype=jnp.float32)
    bernoulli = jax.random.bernoulli(k_bern, lmda).astype(jnp.float32)

    out = jax.block_until_ready(
        trid_apply(x, mu_random, var_random, bernoulli, eps=1e-6))
    ref = _reference(x, mu_random, var_random, bernoulli, eps=1e-6)
    assert jnp.allclose(out, ref, atol=1e-5, rtol=1e-5), "mismatch vs reference"

    # Second case: R = 15 (not a multiple of 8) -> ragged last block, no pad.
    N2, C2 = 3, 5
    x_b = jax.random.normal(k_x2, (N2, C2, H, W), dtype=jnp.float32)
    mu_b = jax.random.uniform(k_mu, (N2, C2, 1, 1), dtype=jnp.float32)
    var_b = jax.random.uniform(k_var, (N2, C2, 1, 1), dtype=jnp.float32)
    lmda_b = jax.random.beta(k_fwd, 0.1, 0.1, (N2, C2, 1, 1), dtype=jnp.float32)
    bern_b = jax.random.bernoulli(k_bern, lmda_b).astype(jnp.float32)

    out_b = jax.block_until_ready(
        trid_apply(x_b, mu_b, var_b, bern_b, eps=1e-6))
    ref_b = _reference(x_b, mu_b, var_b, bern_b, eps=1e-6)
    assert jnp.allclose(out_b, ref_b, atol=1e-5, rtol=1e-5), "mismatch (ragged)"

    # Third case: bf16 I/O path (compute in f32 inside the kernel).
    x_h = x.astype(jnp.bfloat16)
    out_h = jax.block_until_ready(
        trid_apply(x_h, mu_random, var_random, bernoulli, eps=1e-6))
    ref_h = _reference(x_h, mu_random, var_random, bernoulli, eps=1e-6)
    assert out_h.dtype == jnp.bfloat16
    assert jnp.allclose(out_h.astype(jnp.float32), ref_h, atol=5e-2, rtol=5e-2), \
        "mismatch (bf16)"

    # Full forward (probabilistic gate via lax.cond).
    full = jax.block_until_ready(trid_forward(x, k_fwd, p=0.5))
    assert full.shape == x.shape and full.dtype == x.dtype

    print("KERNEL_OK")
</pallas_src>

<mosaic_0001>
module attributes {stable_mosaic.version = 11 : i64} {
  func.func @_trid_kernel(%arg0: i32, %arg1: memref<8x256xf32, #tpu.memory_space<vmem>>, %arg2: memref<8x3xf32, #tpu.memory_space<vmem>>, %arg3: memref<8x256xf32, #tpu.memory_space<vmem>>) attributes {dimension_semantics = [#tpu.dimension_semantics<parallel>], iteration_bounds = array<i64: 1>, scalar_prefetch = 0 : i64, scratch_operands = 0 : i64, tpu.core_type = #tpu.core_type<tc>, window_params = [{transform_indices = @transform_0, window_bounds = array<i64: 8, 256>}, {transform_indices = @transform_1, window_bounds = array<i64: 8, 3>}, {transform_indices = @transform_2, window_bounds = array<i64: 8, 256>}]} {
    %c0 = arith.constant 0 : index
    %c0_0 = arith.constant 0 : index
    %0 = vector.load %arg1[%c0, %c0_0] : memref<8x256xf32, #tpu.memory_space<vmem>>, vector<8x256xf32>
    %cst = arith.constant dense<0.000000e+00> : vector<8xf32>
    %1 = vector.multi_reduction <add>, %0, %cst [1] : vector<8x256xf32> to vector<8xf32>
    %2 = vector.shape_cast %1 : vector<8xf32> to vector<8x1xf32>
    %3 = arith.mulf %0, %0 : vector<8x256xf32>
    %cst_1 = arith.constant dense<0.000000e+00> : vector<8xf32>
    %4 = vector.multi_reduction <add>, %3, %cst_1 [1] : vector<8x256xf32> to vector<8xf32>
    %5 = vector.shape_cast %4 : vector<8xf32> to vector<8x1xf32>
    %cst_2 = arith.constant 3.906250e-03 : f32
    %6 = vector.broadcast %cst_2 : f32 to vector<8x1xf32>
    %7 = arith.mulf %2, %6 : vector<8x1xf32>
    %8 = arith.mulf %2, %7 : vector<8x1xf32>
    %9 = arith.subf %5, %8 : vector<8x1xf32>
    %cst_3 = arith.constant 0.00392156886 : f32
    %10 = vector.broadcast %cst_3 : f32 to vector<8x1xf32>
    %11 = arith.mulf %9, %10 : vector<8x1xf32>
    %cst_4 = arith.constant 0.000000e+00 : f32
    %12 = vector.broadcast %cst_4 : f32 to vector<8x1xf32>
    %13 = arith.maximumf %11, %12 : vector<8x1xf32>
    %cst_5 = arith.constant 9.99999997E-7 : f32
    %14 = vector.broadcast %cst_5 : f32 to vector<8x1xf32>
    %15 = arith.addf %13, %14 : vector<8x1xf32>
    %16 = math.sqrt %15 : vector<8x1xf32>
    %c0_6 = arith.constant 0 : index
    %c0_7 = arith.constant 0 : index
    %17 = vector.load %arg2[%c0_6, %c0_7] : memref<8x3xf32, #tpu.memory_space<vmem>>, vector<8x1xf32>
    %c0_8 = arith.constant 0 : index
    %c1 = arith.constant 1 : index
    %18 = vector.load %arg2[%c0_8, %c1] : memref<8x3xf32, #tpu.memory_space<vmem>>, vector<8x1xf32>
    %c0_9 = arith.constant 0 : index
    %c2 = arith.constant 2 : index
    %19 = vector.load %arg2[%c0_9, %c2] : memref<8x3xf32, #tpu.memory_space<vmem>>, vector<8x1xf32>
    %20 = arith.mulf %7, %19 : vector<8x1xf32>
    %21 = arith.addf %17, %20 : vector<8x1xf32>
    %22 = arith.mulf %16, %19 : vector<8x1xf32>
    %23 = arith.addf %18, %22 : vector<8x1xf32>
    %24 = arith.divf %23, %16 : vector<8x1xf32>
    %25 = arith.mulf %7, %24 : vector<8x1xf32>
    %26 = arith.subf %21, %25 : vector<8x1xf32>
    %27 = vector.broadcast %24 : vector<8x1xf32> to vector<8x256xf32>
    %28 = arith.mulf %0, %27 : vector<8x256xf32>
    %29 = vector.broadcast %26 : vector<8x1xf32> to vector<8x256xf32>
    %30 = arith.addf %28, %29 : vector<8x256xf32>
    %c0_10 = arith.constant 0 : index
    %c0_11 = arith.constant 0 : index
    %31 = vector.load %arg3[%c0_10, %c0_11] : memref<8x256xf32, #tpu.memory_space<vmem>>, vector<8x256xf32>
    tpu.vector_store %arg3[%c0_10, %c0_11], %30 {strides = array<i32>} : memref<8x256xf32, #tpu.memory_space<vmem>>, vector<8x256xf32>,
    return
  }
  func.func @transform_0(%arg0: i32) -> (i32, i32) {
    %c0_i32 = arith.constant 0 : i32
    %c0_i32_0 = arith.constant 0 : i32
    return %arg0, %c0_i32 : i32, i32
  }
  func.func @transform_1(%arg0: i32) -> (i32, i32) {
    %c0_i32 = arith.constant 0 : i32
    %c0_i32_0 = arith.constant 0 : i32
    return %arg0, %c0_i32 : i32, i32
  }
  func.func @transform_2(%arg0: i32) -> (i32, i32) {
    %c0_i32 = arith.constant 0 : i32
    %c0_i32_0 = arith.constant 0 : i32
    return %arg0, %c0_i32 : i32, i32
  }
}

</mosaic_0001>

<llo_original>
// kernel: tpu_custom_call.1
$region0: #{tpu_custom_call.1}
  #allocation0 [shape = 'u32[]', space=smem, size = 0x4, offset = 0x4, fixed_abs, tag = 'smem constant byte address 0x4 - core index']
  #allocation1 [shape = 'u32[144,128]{1,0:T(1,128)}', space=vmem, size = 0x12000, scoped, tag = 'internal scratch']
  %s0 = inlined_call_operand.hbm [shape: f32[8,256], index: 0, kind: input, shape index: {}]
  %s1 = inlined_call_operand.vmem [shape: f32[8,3], index: 1, kind: input, shape index: {}]
  %s2 = inlined_call_operand.hbm [shape: f32[8,256], index: 2, kind: output, shape index: {}]
  %s3 = sld [smem:[#allocation0]]
  $region22: #{tpu_custom_call.1} parent=0
    _
  %s5 = ssub.s32 1, %s3
  %s6 = scalar_select 0, %s5, %s3
  $region1: #{tpu_custom_call.1} parent=0
    #allocation2 [shape = 'u8[8192]{0}', space=vmem, size = 0x2000, scoped, tag = 'input window, operand 0, single buffered']
    #allocation3 [shape = 's32[1]{0}', space=sflag, size = 0x4, scoped, tag = 'scoped memory for tpu_custom_call.1']
    #allocation4 [shape = 's32[1]{0}', space=sflag, size = 0x4, scoped, tag = 'scoped memory for tpu_custom_call.1']
    #allocation5 [shape = 'u8[8192]{0}', space=vmem, size = 0x2000, scoped, tag = 'output window, operand 0, single buffered']
    %7 = vsyncpa [#allocation3], 0
    %8 = vsyncpa [#allocation4], 0
    // Predicated region
    $region2: #{tpu_custom_call.1} parent=1 // pred_check
      _
    $region3: #{tpu_custom_call.1} parent=1 // pred_check_branch
      %10 = sbr.rel (0) target = $region5
    $region4: #{tpu_custom_call.1} parent=1 // pred_region
      %s12 = ssub.s32 256, 256
      %13 = vsyncadd [#allocation3], %s12
      %s15 = sshll.u32 [#allocation2], 4
      %s16 = int_to_ptr.vmem [resolvable:$true] %s15
      %18 = dma.hbm_to_vmem [thread:$0]  %s0, 256, %s16, [#allocation3]
    $region5: #{tpu_custom_call.1} parent=1 // pred_fallthru
      _
    // Predicated region
    $region6: #{tpu_custom_call.1} parent=1 // pred_check
      _
    $region7: #{tpu_custom_call.1} parent=1 // pred_check_branch
      %20 = sbr.rel (0) target = $region9
    $region8: #{tpu_custom_call.1} parent=1 // pred_region
      _
    $region9: #{tpu_custom_call.1} parent=1 // pred_fallthru
      _
    // Predicated region
    $region10: #{tpu_custom_call.1} parent=1 // pred_check
      _
    $region11: #{tpu_custom_call.1} parent=1 // pred_check_branch
      %22 = sbr.rel (0) target = $region13
    $region12: #{tpu_custom_call.1} parent=1 // pred_region
      %23 = dma.done [#allocation3], 256
    $region13: #{tpu_custom_call.1} parent=1 // pred_fallthru
      _
    %v24 = vld [vmem:[#allocation2] sm:$0xff]
    %v25 = vld [vmem:[#allocation2 + $0x8] sm:$0xff]
    %v26 = vadd.f32 %v24, %v25
    %27 = vadd.xlane.f32.xlu0 %v26
    %v28 = vpop.xlane.xlu0 %27
    %v29 = vmul.f32 %v24, %v24
    %v30 = vmul.f32 %v25, %v25
    %v31 = vadd.f32 %v29, %v30
    %32 = vadd.xlane.f32.xlu0 %v31
    %v33 = vpop.xlane.xlu0 %32
    %v34 = vmul.f32 %v28, 0.00390625
    %v35 = vmul.f32 %v28, %v34
    %v36 = vsub.f32 %v33, %v35
    %v37 = vmul.f32 %v36, 0.003921569
    %v38 = vmax.f32 %v37, 0.0
    %v39 = vadd.f32 %v38, 1e-06
    %v40 = vrsqrt.pop %v39
    %v41 = vmul.f32 %v39, %v40
    %vm42 = vcmp.eq.f32.partialorder %v39, inf
    %v43 = vsel %vm42, %v39, %v41
    %vm44 = vcmp.eq.f32.partialorder %v39, 0.0
    %v45 = vand.u32 %v39, 2147483648
    %v46 = vsel %vm44, %v45, %v43
    %v47 = vld [vmem:[%s1] sm:$0xff]
    %v48 = vmul.f32 %v34, %v47
    %50 = vrot.lane.b32.xlu0 %v48, 126
    %v51 = vpop.permute.xlu0 %50
    %v53 = vadd.f32 %v47, %v51
    %v54 = vmul.f32 %v46, %v47
    %56 = vrot.lane.b32.xlu0 %v54, 127
    %v57 = vpop.permute.xlu0 %56
    %v59 = vadd.f32 %v47, %v57
    %v60 = vrcp.pop %v46
    %v61 = vmul.f32 %v59, %v60
    %v62 = vmul.f32 %v34, %v61
    %64 = vrot.lane.b32.xlu0 %v62, 127
    %v65 = vpop.permute.xlu0 %64
    %v67 = vsub.f32 %v53, %v65
    %69 = vset.pattern.permute.xlu0 1
    %70 = vperm.xlu0 %69, %v61
    %v71 = vpop.permute.xlu0 %70
    %v73 = vmul.f32 %v24, %v71
    %v74 = vmul.f32 %v25, %v71
    %76 = vset.pattern.permute.xlu0 0
    %77 = vperm.xlu0 %76, %v67
    %v78 = vpop.permute.xlu0 %77
    %v80 = vadd.f32 %v73, %v78
    %v81 = vadd.f32 %v74, %v78
    %82 = vst [vmem:[#allocation5] sm:$0xff] %v80
    %83 = vst [vmem:[#allocation5 + $0x8] sm:$0xff] %v81
    // Predicated region
    $region14: #{tpu_custom_call.1} parent=1 // pred_check
      _
    $region15: #{tpu_custom_call.1} parent=1 // pred_check_branch
      %85 = sbr.rel (0) target = $region17
    $region16: #{tpu_custom_call.1} parent=1 // pred_region
      %s87 = ssub.s32 256, 256
      %88 = vsyncadd [#allocation4], %s87
      %s90 = sshll.u32 [#allocation5], 4
      %s91 = int_to_ptr.vmem [resolvable:$true] %s90
      %93 = dma.vmem_to_hbm [thread:$0]  %s91, 256, %s2, [#allocation4]
    $region17: #{tpu_custom_call.1} parent=1 // pred_fallthru
      _
    // Predicated region
    $region18: #{tpu_custom_call.1} parent=1 // pred_check
      _
    $region19: #{tpu_custom_call.1} parent=1 // pred_check_branch
      %95 = sbr.rel (0) target = $region21
    $region20: #{tpu_custom_call.1} parent=1 // pred_region
      %96 = dma.done [#allocation4], 256
    $region21: #{tpu_custom_call.1} parent=1 // pred_fallthru
      _
    %97 = vsyncpa [#allocation3], 1
    %98 = vsyncpa [#allocation4], 1

</llo_original>
